<compile_context>
chip_gen: v7x
topology: tpu7x:2x2x1
jax: 0.10.0
libtpu: 0.0.40
codegen_flags: <defaults>
</compile_context>

<pallas_src>
import jax
import jax.numpy as jnp
from jax.experimental import pallas as pl
from jax.experimental.pallas import tpu as pltpu


def _round_up(x, m):
    return ((x + m - 1) // m) * m


def _make_mlp_kernel(n_layers):
    """Kernel over refs = (x, w1, b1, ..., wn, bn, out).

    x/w are bf16, biases f32; each layer: y = relu(x @ w + b) with f32
    accumulation; intermediate activations cast back to bf16.
    """

    def kernel(*refs):
        x_ref = refs[0]
        o_ref = refs[-1]
        h = x_ref[...]  # bf16 (TILE_B, K_pad)
        for li in range(n_layers):
            w_ref = refs[1 + 2 * li]
            b_ref = refs[2 + 2 * li]
            y = jnp.dot(h, w_ref[...], preferred_element_type=jnp.float32)
            y = jnp.maximum(y + b_ref[...], 0.0)  # f32 bias + ReLU
            h = y if li == n_layers - 1 else y.astype(jnp.bfloat16)
        o_ref[...] = h.astype(o_ref.dtype)

    return kernel


def mlp_encoder_forward(x, params, tile_b=None):
    """x: (batch, window_size, num_sensors) float32. Returns (batch, 64) f32."""
    batch = x.shape[0]
    x_flat = x.reshape(batch, -1).astype(jnp.float32)  # nn.Flatten()
    in_features = x_flat.shape[1]
    n_layers = len(params)

    # --- layer dims, all padded to lane multiples (128) ----------------------
    dims = [in_features] + [w.shape[1] for w, _ in params]      # e.g. [32,256,128,64,64,64,64]
    dims_pad = [_round_up(d, 128) for d in dims]
    out_dim = dims[-1]                                           # 64
    out_pad = dims_pad[-1]                                       # 128
    in_pad = dims_pad[0]

    # --- batch tiling ---------------------------------------------------------
    if tile_b is None:
        # Fill the MXU M dimension for large batches, stay small for tiny ones.
        tile_b = min(1024, _round_up(batch, 8))
    batch_pad = _round_up(batch, tile_b)

    x_p = jnp.pad(
        x_flat, ((0, batch_pad - batch), (0, in_pad - in_features))
    ).astype(jnp.bfloat16)

    # --- parameter packing: w as (in_pad, out_pad) bf16, b as (1, out_pad) f32
    flat_args = []
    for li, (w, b) in enumerate(params):
        d_in, d_out = dims[li], dims[li + 1]
        p_in, p_out = dims_pad[li], dims_pad[li + 1]
        w_p = jnp.pad(w, ((0, p_in - d_in), (0, p_out - d_out)))
        b_p = jnp.pad(b, (0, p_out - d_out))
        flat_args.append(w_p.astype(jnp.bfloat16))
        flat_args.append(b_p.reshape(1, -1).astype(jnp.float32))

    # --- specs ----------------------------------------------------------------
    grid = (pl.cdiv(batch_pad, tile_b),)
    x_spec = pl.BlockSpec((tile_b, in_pad), lambda i: (i, 0))
    param_specs = [
        pl.BlockSpec(a.shape, lambda i: (0, 0))  # full array, VMEM-resident
        for a in flat_args
    ]
    out_spec = pl.BlockSpec((tile_b, out_pad), lambda i: (i, 0))

    # Advisory cost hint for the XLA scheduler.
    flops = 2 * batch_pad * sum(dims_pad[i] * dims_pad[i + 1] for i in range(n_layers))
    bytes_accessed = (
        x_p.size * 2
        + sum(int(a.size) * a.dtype.itemsize for a in flat_args)
        + batch_pad * out_pad * 4
    )
    cost = pl.CostEstimate(flops=flops, transcendentals=0, bytes_accessed=bytes_accessed)

    out = pl.pallas_call(
        _make_mlp_kernel(n_layers),
        out_shape=jax.ShapeDtypeStruct((batch_pad, out_pad), jnp.float32),
        grid=grid,
        in_specs=[x_spec] + param_specs,
        out_specs=out_spec,
        compiler_params=pltpu.CompilerParams(
            dimension_semantics=("parallel",),      # megacore on v7x
            vmem_limit_bytes=32 * 1024 * 1024,      # explicit, fits all gens
        ),
        cost_estimate=cost,
    )(x_p, *flat_args)

    return out[:batch, :out_dim]


def init_params(num_sensors, window_size, bottleneck_size=3, seed=0):
    """PyTorch-default-style Linear init (uniform +-1/sqrt(fan_in)).
    Weights stored as (in, out) = torch_weight.T."""
    key = jax.random.PRNGKey(seed)
    dims = [num_sensors * window_size, 256, 128, 64] + [64] * bottleneck_size

    params = []
    for i in range(len(dims) - 1):
        fan_in, fan_out = dims[i], dims[i + 1]
        key, kw, kb = jax.random.split(key, 3)
        bound = 1.0 / jnp.sqrt(jnp.float32(fan_in))
        w = jax.random.uniform(kw, (fan_in, fan_out), jnp.float32, -bound, bound)
        b = jax.random.uniform(kb, (fan_out,), jnp.float32, -bound, bound)
        params.append((w, b))
    return params


def reference_forward(x, params):
    """Pure-f32 JAX reference of the module semantics."""
    h = x.reshape(x.shape[0], -1)
    for w, b in params:
        h = jnp.maximum(h @ w + b, 0.0)
    return h


def reference_forward_bf16(x, params):
    """Reference mirroring the kernel's precision policy (bf16 MXU operands,
    f32 accumulation, f32 bias/ReLU)."""
    h = x.reshape(x.shape[0], -1).astype(jnp.float32)
    for w, b in params:
        y = jnp.dot(
            h.astype(jnp.bfloat16),
            w.astype(jnp.bfloat16),
            preferred_element_type=jnp.float32,
        )
        h = jnp.maximum(y + b.astype(jnp.float32), 0.0)
    return h


if __name__ == "__main__":
    num_sensors = 4
    window_size = 8
    batch = 2

    key = jax.random.PRNGKey(0)
    x = jax.random.normal(key, (batch, window_size, num_sensors), jnp.float32)

    params = init_params(num_sensors, window_size, bottleneck_size=3, seed=0)

    out = jax.block_until_ready(mlp_encoder_forward(x, params))

    ref_bf16 = reference_forward_bf16(x, params)
    ref_f32 = reference_forward(x, params)

    assert out.shape == (batch, 64), out.shape
    # Tight check vs. a reference with the same precision policy.
    assert jnp.allclose(out, ref_bf16, atol=1e-3, rtol=1e-2), (
        float(jnp.max(jnp.abs(out - ref_bf16)))
    )
    # Loose check vs. the pure-f32 module semantics (bf16 MXU operands).
    assert jnp.allclose(out, ref_f32, atol=5e-2, rtol=5e-2), (
        float(jnp.max(jnp.abs(out - ref_f32)))
    )
    print("KERNEL_OK")
</pallas_src>

<mosaic_0001>
module attributes {stable_mosaic.version = 11 : i64} {
  func.func @kernel(%arg0: i32, %arg1: memref<8x128xbf16, #tpu.memory_space<vmem>>, %arg2: memref<128x256xbf16, #tpu.memory_space<vmem>>, %arg3: memref<1x256xf32, #tpu.memory_space<vmem>>, %arg4: memref<256x128xbf16, #tpu.memory_space<vmem>>, %arg5: memref<1x128xf32, #tpu.memory_space<vmem>>, %arg6: memref<128x128xbf16, #tpu.memory_space<vmem>>, %arg7: memref<1x128xf32, #tpu.memory_space<vmem>>, %arg8: memref<128x128xbf16, #tpu.memory_space<vmem>>, %arg9: memref<1x128xf32, #tpu.memory_space<vmem>>, %arg10: memref<128x128xbf16, #tpu.memory_space<vmem>>, %arg11: memref<1x128xf32, #tpu.memory_space<vmem>>, %arg12: memref<128x128xbf16, #tpu.memory_space<vmem>>, %arg13: memref<1x128xf32, #tpu.memory_space<vmem>>, %arg14: memref<8x128xf32, #tpu.memory_space<vmem>>) attributes {dimension_semantics = [#tpu.dimension_semantics<parallel>], iteration_bounds = array<i64: 1>, scalar_prefetch = 0 : i64, scratch_operands = 0 : i64, tpu.core_type = #tpu.core_type<tc>, window_params = [{transform_indices = @transform_0, window_bounds = array<i64: 8, 128>}, {pipeline_mode = #tpu.pipeline_mode<synchronous>, transform_indices = @transform_1, window_bounds = array<i64: 128, 256>}, {pipeline_mode = #tpu.pipeline_mode<synchronous>, transform_indices = @transform_2, window_bounds = array<i64: 1, 256>}, {pipeline_mode = #tpu.pipeline_mode<synchronous>, transform_indices = @transform_3, window_bounds = array<i64: 256, 128>}, {pipeline_mode = #tpu.pipeline_mode<synchronous>, transform_indices = @transform_4, window_bounds = array<i64: 1, 128>}, {pipeline_mode = #tpu.pipeline_mode<synchronous>, transform_indices = @transform_5, window_bounds = array<i64: 128, 128>}, {pipeline_mode = #tpu.pipeline_mode<synchronous>, transform_indices = @transform_6, window_bounds = array<i64: 1, 128>}, {pipeline_mode = #tpu.pipeline_mode<synchronous>, transform_indices = @transform_7, window_bounds = array<i64: 128, 128>}, {pipeline_mode = #tpu.pipeline_mode<synchronous>, transform_indices = @transform_8, window_bounds = array<i64: 1, 128>}, {pipeline_mode = #tpu.pipeline_mode<synchronous>, transform_indices = @transform_9, window_bounds = array<i64: 128, 128>}, {pipeline_mode = #tpu.pipeline_mode<synchronous>, transform_indices = @transform_10, window_bounds = array<i64: 1, 128>}, {pipeline_mode = #tpu.pipeline_mode<synchronous>, transform_indices = @transform_11, window_bounds = array<i64: 128, 128>}, {pipeline_mode = #tpu.pipeline_mode<synchronous>, transform_indices = @transform_12, window_bounds = array<i64: 1, 128>}, {transform_indices = @transform_13, window_bounds = array<i64: 8, 128>}]} {
    %c0 = arith.constant 0 : index
    %c0_0 = arith.constant 0 : index
    %0 = vector.load %arg1[%c0, %c0_0] : memref<8x128xbf16, #tpu.memory_space<vmem>>, vector<8x128xbf16>
    %c0_1 = arith.constant 0 : index
    %c0_2 = arith.constant 0 : index
    %1 = vector.load %arg2[%c0_1, %c0_2] : memref<128x256xbf16, #tpu.memory_space<vmem>>, vector<128x256xbf16>
    %cst = arith.constant dense<0.000000e+00> : vector<8x256xf32>
    %2 = tpu.matmul %0, %1, %cst {dimension_numbers = #tpu.dot_dimension_numbers<[1], [0], [0], [1], [0, 0, 1, 1], [], []>} : vector<8x128xbf16>, vector<128x256xbf16>, vector<8x256xf32> -> vector<8x256xf32>
    %c0_3 = arith.constant 0 : index
    %c0_4 = arith.constant 0 : index
    %3 = vector.load %arg3[%c0_3, %c0_4] : memref<1x256xf32, #tpu.memory_space<vmem>>, vector<1x256xf32>
    %4 = vector.broadcast %3 : vector<1x256xf32> to vector<8x256xf32>
    %5 = arith.addf %2, %4 : vector<8x256xf32>
    %cst_5 = arith.constant 0.000000e+00 : f32
    %6 = vector.broadcast %cst_5 : f32 to vector<8x256xf32>
    %7 = arith.maximumf %5, %6 : vector<8x256xf32>
    %8 = arith.truncf %7 : vector<8x256xf32> to vector<8x256xbf16>
    %c0_6 = arith.constant 0 : index
    %c0_7 = arith.constant 0 : index
    %9 = vector.load %arg4[%c0_6, %c0_7] : memref<256x128xbf16, #tpu.memory_space<vmem>>, vector<256x128xbf16>
    %cst_8 = arith.constant dense<0.000000e+00> : vector<8x128xf32>
    %10 = tpu.matmul %8, %9, %cst_8 {dimension_numbers = #tpu.dot_dimension_numbers<[1], [0], [0], [1], [0, 0, 1, 1], [], []>} : vector<8x256xbf16>, vector<256x128xbf16>, vector<8x128xf32> -> vector<8x128xf32>
    %c0_9 = arith.constant 0 : index
    %c0_10 = arith.constant 0 : index
    %11 = vector.load %arg5[%c0_9, %c0_10] : memref<1x128xf32, #tpu.memory_space<vmem>>, vector<1x128xf32>
    %12 = vector.broadcast %11 : vector<1x128xf32> to vector<8x128xf32>
    %13 = arith.addf %10, %12 : vector<8x128xf32>
    %cst_11 = arith.constant 0.000000e+00 : f32
    %14 = vector.broadcast %cst_11 : f32 to vector<8x128xf32>
    %15 = arith.maximumf %13, %14 : vector<8x128xf32>
    %16 = arith.truncf %15 : vector<8x128xf32> to vector<8x128xbf16>
    %c0_12 = arith.constant 0 : index
    %c0_13 = arith.constant 0 : index
    %17 = vector.load %arg6[%c0_12, %c0_13] : memref<128x128xbf16, #tpu.memory_space<vmem>>, vector<128x128xbf16>
    %cst_14 = arith.constant dense<0.000000e+00> : vector<8x128xf32>
    %18 = tpu.matmul %16, %17, %cst_14 {dimension_numbers = #tpu.dot_dimension_numbers<[1], [0], [0], [1], [0, 0, 1, 1], [], []>} : vector<8x128xbf16>, vector<128x128xbf16>, vector<8x128xf32> -> vector<8x128xf32>
    %c0_15 = arith.constant 0 : index
    %c0_16 = arith.constant 0 : index
    %19 = vector.load %arg7[%c0_15, %c0_16] : memref<1x128xf32, #tpu.memory_space<vmem>>, vector<1x128xf32>
    %20 = vector.broadcast %19 : vector<1x128xf32> to vector<8x128xf32>
    %21 = arith.addf %18, %20 : vector<8x128xf32>
    %cst_17 = arith.constant 0.000000e+00 : f32
    %22 = vector.broadcast %cst_17 : f32 to vector<8x128xf32>
    %23 = arith.maximumf %21, %22 : vector<8x128xf32>
    %24 = arith.truncf %23 : vector<8x128xf32> to vector<8x128xbf16>
    %c0_18 = arith.constant 0 : index
    %c0_19 = arith.constant 0 : index
    %25 = vector.load %arg8[%c0_18, %c0_19] : memref<128x128xbf16, #tpu.memory_space<vmem>>, vector<128x128xbf16>
    %cst_20 = arith.constant dense<0.000000e+00> : vector<8x128xf32>
    %26 = tpu.matmul %24, %25, %cst_20 {dimension_numbers = #tpu.dot_dimension_numbers<[1], [0], [0], [1], [0, 0, 1, 1], [], []>} : vector<8x128xbf16>, vector<128x128xbf16>, vector<8x128xf32> -> vector<8x128xf32>
    %c0_21 = arith.constant 0 : index
    %c0_22 = arith.constant 0 : index
    %27 = vector.load %arg9[%c0_21, %c0_22] : memref<1x128xf32, #tpu.memory_space<vmem>>, vector<1x128xf32>
    %28 = vector.broadcast %27 : vector<1x128xf32> to vector<8x128xf32>
    %29 = arith.addf %26, %28 : vector<8x128xf32>
    %cst_23 = arith.constant 0.000000e+00 : f32
    %30 = vector.broadcast %cst_23 : f32 to vector<8x128xf32>
    %31 = arith.maximumf %29, %30 : vector<8x128xf32>
    %32 = arith.truncf %31 : vector<8x128xf32> to vector<8x128xbf16>
    %c0_24 = arith.constant 0 : index
    %c0_25 = arith.constant 0 : index
    %33 = vector.load %arg10[%c0_24, %c0_25] : memref<128x128xbf16, #tpu.memory_space<vmem>>, vector<128x128xbf16>
    %cst_26 = arith.constant dense<0.000000e+00> : vector<8x128xf32>
    %34 = tpu.matmul %32, %33, %cst_26 {dimension_numbers = #tpu.dot_dimension_numbers<[1], [0], [0], [1], [0, 0, 1, 1], [], []>} : vector<8x128xbf16>, vector<128x128xbf16>, vector<8x128xf32> -> vector<8x128xf32>
    %c0_27 = arith.constant 0 : index
    %c0_28 = arith.constant 0 : index
    %35 = vector.load %arg11[%c0_27, %c0_28] : memref<1x128xf32, #tpu.memory_space<vmem>>, vector<1x128xf32>
    %36 = vector.broadcast %35 : vector<1x128xf32> to vector<8x128xf32>
    %37 = arith.addf %34, %36 : vector<8x128xf32>
    %cst_29 = arith.constant 0.000000e+00 : f32
    %38 = vector.broadcast %cst_29 : f32 to vector<8x128xf32>
    %39 = arith.maximumf %37, %38 : vector<8x128xf32>
    %40 = arith.truncf %39 : vector<8x128xf32> to vector<8x128xbf16>
    %c0_30 = arith.constant 0 : index
    %c0_31 = arith.constant 0 : index
    %41 = vector.load %arg12[%c0_30, %c0_31] : memref<128x128xbf16, #tpu.memory_space<vmem>>, vector<128x128xbf16>
    %cst_32 = arith.constant dense<0.000000e+00> : vector<8x128xf32>
    %42 = tpu.matmul %40, %41, %cst_32 {dimension_numbers = #tpu.dot_dimension_numbers<[1], [0], [0], [1], [0, 0, 1, 1], [], []>} : vector<8x128xbf16>, vector<128x128xbf16>, vector<8x128xf32> -> vector<8x128xf32>
    %c0_33 = arith.constant 0 : index
    %c0_34 = arith.constant 0 : index
    %43 = vector.load %arg13[%c0_33, %c0_34] : memref<1x128xf32, #tpu.memory_space<vmem>>, vector<1x128xf32>
    %44 = vector.broadcast %43 : vector<1x128xf32> to vector<8x128xf32>
    %45 = arith.addf %42, %44 : vector<8x128xf32>
    %cst_35 = arith.constant 0.000000e+00 : f32
    %46 = vector.broadcast %cst_35 : f32 to vector<8x128xf32>
    %47 = arith.maximumf %45, %46 : vector<8x128xf32>
    %c0_36 = arith.constant 0 : index
    %c0_37 = arith.constant 0 : index
    %48 = vector.load %arg14[%c0_36, %c0_37] : memref<8x128xf32, #tpu.memory_space<vmem>>, vector<8x128xf32>
    tpu.vector_store %arg14[%c0_36, %c0_37], %47 {strides = array<i32>} : memref<8x128xf32, #tpu.memory_space<vmem>>, vector<8x128xf32>,
    return
  }
  func.func @transform_0(%arg0: i32) -> (i32, i32) {
    %c0_i32 = arith.constant 0 : i32
    %c0_i32_0 = arith.constant 0 : i32
    return %arg0, %c0_i32 : i32, i32
  }
  func.func @transform_1(%arg0: i32) -> (i32, i32) {
    %c0_i32 = arith.constant 0 : i32
    %c0_i32_0 = arith.constant 0 : i32
    %c0_i32_1 = arith.constant 0 : i32
    return %c0_i32, %c0_i32_0 : i32, i32
  }
  func.func @transform_2(%arg0: i32) -> (i32, i32) {
    %c0_i32 = arith.constant 0 : i32
    %c0_i32_0 = arith.constant 0 : i32
    %c0_i32_1 = arith.constant 0 : i32
    return %c0_i32, %c0_i32_0 : i32, i32
  }
  func.func @transform_3(%arg0: i32) -> (i32, i32) {
    %c0_i32 = arith.constant 0 : i32
    %c0_i32_0 = arith.constant 0 : i32
    %c0_i32_1 = arith.constant 0 : i32
    return %c0_i32, %c0_i32_0 : i32, i32
  }
  func.func @transform_4(%arg0: i32) -> (i32, i32) {
    %c0_i32 = arith.constant 0 : i32
    %c0_i32_0 = arith.constant 0 : i32
    %c0_i32_1 = arith.constant 0 : i32
    return %c0_i32, %c0_i32_0 : i32, i32
  }
  func.func @transform_5(%arg0: i32) -> (i32, i32) {
    %c0_i32 = arith.constant 0 : i32
    %c0_i32_0 = arith.constant 0 : i32
    %c0_i32_1 = arith.constant 0 : i32
    return %c0_i32, %c0_i32_0 : i32, i32
  }
  func.func @transform_6(%arg0: i32) -> (i32, i32) {
    %c0_i32 = arith.constant 0 : i32
    %c0_i32_0 = arith.constant 0 : i32
    %c0_i32_1 = arith.constant 0 : i32
    return %c0_i32, %c0_i32_0 : i32, i32
  }
  func.func @transform_7(%arg0: i32) -> (i32, i32) {
    %c0_i32 = arith.constant 0 : i32
    %c0_i32_0 = arith.constant 0 : i32
    %c0_i32_1 = arith.constant 0 : i32
    return %c0_i32, %c0_i32_0 : i32, i32
  }
  func.func @transform_8(%arg0: i32) -> (i32, i32) {
    %c0_i32 = arith.constant 0 : i32
    %c0_i32_0 = arith.constant 0 : i32
    %c0_i32_1 = arith.constant 0 : i32
    return %c0_i32, %c0_i32_0 : i32, i32
  }
  func.func @transform_9(%arg0: i32) -> (i32, i32) {
    %c0_i32 = arith.constant 0 : i32
    %c0_i32_0 = arith.constant 0 : i32
    %c0_i32_1 = arith.constant 0 : i32
    return %c0_i32, %c0_i32_0 : i32, i32
  }
  func.func @transform_10(%arg0: i32) -> (i32, i32) {
    %c0_i32 = arith.constant 0 : i32
    %c0_i32_0 = arith.constant 0 : i32
    %c0_i32_1 = arith.constant 0 : i32
    return %c0_i32, %c0_i32_0 : i32, i32
  }
  func.func @transform_11(%arg0: i32) -> (i32, i32) {
    %c0_i32 = arith.constant 0 : i32
    %c0_i32_0 = arith.constant 0 : i32
    %c0_i32_1 = arith.constant 0 : i32
    return %c0_i32, %c0_i32_0 : i32, i32
  }
  func.func @transform_12(%arg0: i32) -> (i32, i32) {
    %c0_i32 = arith.constant 0 : i32
    %c0_i32_0 = arith.constant 0 : i32
    %c0_i32_1 = arith.constant 0 : i32
    return %c0_i32, %c0_i32_0 : i32, i32
  }
  func.func @transform_13(%arg0: i32) -> (i32, i32) {
    %c0_i32 = arith.constant 0 : i32
    %c0_i32_0 = arith.constant 0 : i32
    return %arg0, %c0_i32 : i32, i32
  }
}

</mosaic_0001>

<llo_original>
// kernel: tpu_custom_call.1
$region0: #{tpu_custom_call.1}
  #allocation0 [shape = 'u32[]', space=smem, size = 0x4, offset = 0x4, fixed_abs, tag = 'smem constant byte address 0x4 - core index']
  #allocation1 [shape = 'u32[144,128]{1,0:T(1,128)}', space=vmem, size = 0x12000, scoped, tag = 'internal scratch']
  %s0 = inlined_call_operand.hbm [shape: bf16[8,128], index: 0, kind: input, shape index: {}]
  %s1 = inlined_call_operand.hbm [shape: bf16[128,256], index: 1, kind: input, shape index: {}]
  %s2 = inlined_call_operand.vmem [shape: f32[1,256], index: 2, kind: input, shape index: {}]
  %s3 = inlined_call_operand.hbm [shape: bf16[256,128], index: 3, kind: input, shape index: {}]
  %s4 = inlined_call_operand.vmem [shape: f32[1,128], index: 4, kind: input, shape index: {}]
  %s5 = inlined_call_operand.hbm [shape: bf16[128,128], index: 5, kind: input, shape index: {}]
  %s6 = inlined_call_operand.vmem [shape: f32[1,128], index: 6, kind: input, shape index: {}]
  %s7 = inlined_call_operand.hbm [shape: bf16[128,128], index: 7, kind: input, shape index: {}]
  %s8 = inlined_call_operand.vmem [shape: f32[1,128], index: 8, kind: input, shape index: {}]
  %s9 = inlined_call_operand.hbm [shape: bf16[128,128], index: 9, kind: input, shape index: {}]
  %s10 = inlined_call_operand.vmem [shape: f32[1,128], index: 10, kind: input, shape index: {}]
  %s11 = inlined_call_operand.hbm [shape: bf16[128,128], index: 11, kind: input, shape index: {}]
  %s12 = inlined_call_operand.vmem [shape: f32[1,128], index: 12, kind: input, shape index: {}]
  %s13 = inlined_call_operand.hbm [shape: f32[8,128], index: 13, kind: output, shape index: {}]
  %s14 = sld [smem:[#allocation0]]
  $region90: #{tpu_custom_call.1} parent=0
    _
  %s16 = ssub.s32 1, %s14
  %s17 = scalar_select 0, %s16, %s14
  $region1: #{tpu_custom_call.1} parent=0
    #allocation2 [shape = 'u8[2048]{0}', space=vmem, size = 0x800, scoped, tag = 'input window, operand 0, single buffered']
    #allocation3 [shape = 's32[1]{0}', space=sflag, size = 0x4, scoped, tag = 'scoped memory for tpu_custom_call.1']
    #allocation4 [shape = 's32[1]{0}', space=sflag, size = 0x4, scoped, tag = 'scoped memory for tpu_custom_call.1']
    #allocation5 [shape = 'u8[65536]{0}', space=vmem, size = 0x10000, scoped, tag = 'input window, operand 1, single buffered']
    #allocation6 [shape = 's32[1]{0}', space=sflag, size = 0x4, scoped, tag = 'scoped memory for tpu_custom_call.1']
    #allocation7 [shape = 'u8[65536]{0}', space=vmem, size = 0x10000, scoped, tag = 'input window, operand 3, single buffered']
    #allocation8 [shape = 'u8[32768]{0}', space=vmem, size = 0x8000, scoped, tag = 'input window, operand 5, single buffered']
    #allocation9 [shape = 's32[1]{0}', space=sflag, size = 0x4, scoped, tag = 'scoped memory for tpu_custom_call.1']
    #allocation10 [shape = 'u8[32768]{0}', space=vmem, size = 0x8000, scoped, tag = 'input window, operand 7, single buffered']
    #allocation11 [shape = 'u8[32768]{0}', space=vmem, size = 0x8000, scoped, tag = 'input window, operand 9, single buffered']
    #allocation12 [shape = 's32[1]{0}', space=sflag, size = 0x4, scoped, tag = 'scoped memory for tpu_custom_call.1']
    #allocation13 [shape = 'u8[32768]{0}', space=vmem, size = 0x8000, scoped, tag = 'input window, operand 11, single buffered']
    #allocation14 [shape = 'u8[4096]{0}', space=vmem, size = 0x1000, scoped, tag = 'output window, operand 0, single buffered']
    %18 = vsyncpa [#allocation3], 0
    %19 = vsyncpa [#allocation6], 0
    %20 = vsyncpa [#allocation9], 0
    %21 = vsyncpa [#allocation12], 0
    %22 = vsyncpa [#allocation4], 0
    // Predicated region
    $region2: #{tpu_custom_call.1} parent=1 // pred_check
      _
    $region3: #{tpu_custom_call.1} parent=1 // pred_check_branch
      %24 = sbr.rel (0) target = $region5
    $region4: #{tpu_custom_call.1} parent=1 // pred_region
      %s26 = ssub.s32 64, 64
      %27 = vsyncadd [#allocation3], %s26
      %s29 = sshll.u32 [#allocation2], 4
      %s30 = int_to_ptr.vmem [resolvable:$true] %s29
      %32 = dma.hbm_to_vmem [thread:$0]  %s0, 64, %s30, [#allocation3]
    $region5: #{tpu_custom_call.1} parent=1 // pred_fallthru
      _
    // Predicated region
    $region6: #{tpu_custom_call.1} parent=1 // pred_check
      _
    $region7: #{tpu_custom_call.1} parent=1 // pred_check_branch
      %34 = sbr.rel (0) target = $region9
    $region8: #{tpu_custom_call.1} parent=1 // pred_region
      %s36 = ssub.s32 2048, 2048
      %37 = vsyncadd [#allocation6], %s36
      %s38 = sshll.u32 [#allocation5], 4
      %s39 = int_to_ptr.vmem [resolvable:$true] %s38
      %44 = dma.hbm_to_vmem [thread:$0]  %s1, 2048, %s39, [#allocation6], 128, 128, 8
    $region9: #{tpu_custom_call.1} parent=1 // pred_fallthru
      _
    // Predicated region
    $region10: #{tpu_custom_call.1} parent=1 // pred_check
      _
    $region11: #{tpu_custom_call.1} parent=1 // pred_check_branch
      %46 = sbr.rel (0) target = $region13
    $region12: #{tpu_custom_call.1} parent=1 // pred_region
      _
    $region13: #{tpu_custom_call.1} parent=1 // pred_fallthru
      _
    // Predicated region
    $region14: #{tpu_custom_call.1} parent=1 // pred_check
      _
    $region15: #{tpu_custom_call.1} parent=1 // pred_check_branch
      %48 = sbr.rel (0) target = $region17
    $region16: #{tpu_custom_call.1} parent=1 // pred_region
      %s50 = ssub.s32 2048, 2048
      %51 = vsyncadd [#allocation6], %s50
      %s52 = sshll.u32 [#allocation7], 4
      %s53 = int_to_ptr.vmem [resolvable:$true] %s52
      %58 = dma.hbm_to_vmem [thread:$0]  %s3, 2048, %s53, [#allocation6], 64, 64, 4
    $region17: #{tpu_custom_call.1} parent=1 // pred_fallthru
      _
    // Predicated region
    $region18: #{tpu_custom_call.1} parent=1 // pred_check
      _
    $region19: #{tpu_custom_call.1} parent=1 // pred_check_branch
      %60 = sbr.rel (0) target = $region21
    $region20: #{tpu_custom_call.1} parent=1 // pred_region
      _
    $region21: #{tpu_custom_call.1} parent=1 // pred_fallthru
      _
    // Predicated region
    $region22: #{tpu_custom_call.1} parent=1 // pred_check
      _
    $region23: #{tpu_custom_call.1} parent=1 // pred_check_branch
      %62 = sbr.rel (0) target = $region25
    $region24: #{tpu_custom_call.1} parent=1 // pred_region
      %s64 = ssub.s32 1024, 1024
      %65 = vsyncadd [#allocation9], %s64
      %s66 = sshll.u32 [#allocation8], 4
      %s67 = int_to_ptr.vmem [resolvable:$true] %s66
      %72 = dma.hbm_to_vmem [thread:$0]  %s5, 1024, %s67, [#allocation9], 64, 64, 4
    $region25: #{tpu_custom_call.1} parent=1 // pred_fallthru
      _
    // Predicated region
    $region26: #{tpu_custom_call.1} parent=1 // pred_check
      _
    $region27: #{tpu_custom_call.1} parent=1 // pred_check_branch
      %74 = sbr.rel (0) target = $region29
    $region28: #{tpu_custom_call.1} parent=1 // pred_region
      _
    $region29: #{tpu_custom_call.1} parent=1 // pred_fallthru
      _
    // Predicated region
    $region30: #{tpu_custom_call.1} parent=1 // pred_check
      _
    $region31: #{tpu_custom_call.1} parent=1 // pred_check_branch
      %76 = sbr.rel (0) target = $region33
    $region32: #{tpu_custom_call.1} parent=1 // pred_region
      %s78 = ssub.s32 1024, 1024
      %79 = vsyncadd [#allocation9], %s78
      %s80 = sshll.u32 [#allocation10], 4
      %s81 = int_to_ptr.vmem [resolvable:$true] %s80
      %86 = dma.hbm_to_vmem [thread:$0]  %s7, 1024, %s81, [#allocation9], 64, 64, 4
    $region33: #{tpu_custom_call.1} parent=1 // pred_fallthru
      _
    // Predicated region
    $region34: #{tpu_custom_call.1} parent=1 // pred_check
      _
    $region35: #{tpu_custom_call.1} parent=1 // pred_check_branch
      %88 = sbr.rel (0) target = $region37
    $region36: #{tpu_custom_call.1} parent=1 // pred_region
      _
    $region37: #{tpu_custom_call.1} parent=1 // pred_fallthru
      _
    // Predicated region
    $region38: #{tpu_custom_call.1} parent=1 // pred_check
      _
    $region39: #{tpu_custom_call.1} parent=1 // pred_check_branch
      %90 = sbr.rel (0) target = $region41
    $region40: #{tpu_custom_call.1} parent=1 // pred_region
      %s92 = ssub.s32 1024, 1024
      %93 = vsyncadd [#allocation12], %s92
      %s94 = sshll.u32 [#allocation11], 4
      %s95 = int_to_ptr.vmem [resolvable:$true] %s94
      %100 = dma.hbm_to_vmem [thread:$0]  %s9, 1024, %s95, [#allocation12], 64, 64, 4
    $region41: #{tpu_custom_call.1} parent=1 // pred_fallthru
      _
    // Predicated region
    $region42: #{tpu_custom_call.1} parent=1 // pred_check
      _
    $region43: #{tpu_custom_call.1} parent=1 // pred_check_branch
      %102 = sbr.rel (0) target = $region45
    $region44: #{tpu_custom_call.1} parent=1 // pred_region
      _
    $region45: #{tpu_custom_call.1} parent=1 // pred_fallthru
      _
    // Predicated region
    $region46: #{tpu_custom_call.1} parent=1 // pred_check
      _
    $region47: #{tpu_custom_call.1} parent=1 // pred_check_branch
      %104 = sbr.rel (0) target = $region49
    $region48: #{tpu_custom_call.1} parent=1 // pred_region
      %s106 = ssub.s32 1024, 1024
      %107 = vsyncadd [#allocation12], %s106
      %s108 = sshll.u32 [#allocation13], 4
      %s109 = int_to_ptr.vmem [resolvable:$true] %s108
      %114 = dma.hbm_to_vmem [thread:$0]  %s11, 1024, %s109, [#allocation12], 64, 64, 4
    $region49: #{tpu_custom_call.1} parent=1 // pred_fallthru
      _
    // Predicated region
    $region50: #{tpu_custom_call.1} parent=1 // pred_check
      _
    $region51: #{tpu_custom_call.1} parent=1 // pred_check_branch
      %116 = sbr.rel (0) target = $region53
    $region52: #{tpu_custom_call.1} parent=1 // pred_region
      _
    $region53: #{tpu_custom_call.1} parent=1 // pred_fallthru
      _
    // Predicated region
    $region54: #{tpu_custom_call.1} parent=1 // pred_check
      _
    $region55: #{tpu_custom_call.1} parent=1 // pred_check_branch
      %118 = sbr.rel (0) target = $region57
    $region56: #{tpu_custom_call.1} parent=1 // pred_region
      %119 = dma.done [#allocation3], 64
    $region57: #{tpu_custom_call.1} parent=1 // pred_fallthru
      _
    // Predicated region
    $region58: #{tpu_custom_call.1} parent=1 // pred_check
      _
    $region59: #{tpu_custom_call.1} parent=1 // pred_check_branch
      %121 = sbr.rel (0) target = $region61
    $region60: #{tpu_custom_call.1} parent=1 // pred_region
      %122 = dma.done [#allocation6], 2048
    $region61: #{tpu_custom_call.1} parent=1 // pred_fallthru
      _
    // Predicated region
    $region62: #{tpu_custom_call.1} parent=1 // pred_check
      _
    $region63: #{tpu_custom_call.1} parent=1 // pred_check_branch
      %124 = sbr.rel (0) target = $region65
    $region64: #{tpu_custom_call.1} parent=1 // pred_region
      %125 = dma.done [#allocation6], 2048
    $region65: #{tpu_custom_call.1} parent=1 // pred_fallthru
      _
    // Predicated region
    $region66: #{tpu_custom_call.1} parent=1 // pred_check
      _
    $region67: #{tpu_custom_call.1} parent=1 // pred_check_branch
      %127 = sbr.rel (0) target = $region69
    $region68: #{tpu_custom_call.1} parent=1 // pred_region
      %128 = dma.done [#allocation9], 1024
    $region69: #{tpu_custom_call.1} parent=1 // pred_fallthru
      _
    // Predicated region
    $region70: #{tpu_custom_call.1} parent=1 // pred_check
      _
    $region71: #{tpu_custom_call.1} parent=1 // pred_check_branch
      %130 = sbr.rel (0) target = $region73
    $region72: #{tpu_custom_call.1} parent=1 // pred_region
      %131 = dma.done [#allocation9], 1024
    $region73: #{tpu_custom_call.1} parent=1 // pred_fallthru
      _
    // Predicated region
    $region74: #{tpu_custom_call.1} parent=1 // pred_check
      _
    $region75: #{tpu_custom_call.1} parent=1 // pred_check_branch
      %133 = sbr.rel (0) target = $region77
    $region76: #{tpu_custom_call.1} parent=1 // pred_region
      %134 = dma.done [#allocation12], 1024
    $region77: #{tpu_custom_call.1} parent=1 // pred_fallthru
      _
    // Predicated region
    $region78: #{tpu_custom_call.1} parent=1 // pred_check
      _
    $region79: #{tpu_custom_call.1} parent=1 // pred_check_branch
      %136 = sbr.rel (0) target = $region81
    $region80: #{tpu_custom_call.1} parent=1 // pred_region
      %137 = dma.done [#allocation12], 1024
    $region81: #{tpu_custom_call.1} parent=1 // pred_fallthru
      _
    %v139 = vld [vmem:[#allocation2] sm:$0xf]
    %v140 = vld [vmem:[#allocation5] sm:$0xff]
    %v141 = vld [vmem:[#allocation5 + $0x8] sm:$0xff]
    %v142 = vld [vmem:[#allocation5 + $0x10] sm:$0xff]
    %v143 = vld [vmem:[#allocation5 + $0x18] sm:$0xff]
    %v144 = vld [vmem:[#allocation5 + $0x20] sm:$0xff]
    %v145 = vld [vmem:[#allocation5 + $0x28] sm:$0xff]
    %v146 = vld [vmem:[#allocation5 + $0x30] sm:$0xff]
    %v147 = vld [vmem:[#allocation5 + $0x38] sm:$0xff]
    %v148 = vld [vmem:[#allocation5 + $0x40] sm:$0xff]
    %v149 = vld [vmem:[#allocation5 + $0x48] sm:$0xff]
    %v150 = vld [vmem:[#allocation5 + $0x50] sm:$0xff]
    %v151 = vld [vmem:[#allocation5 + $0x58] sm:$0xff]
    %v152 = vld [vmem:[#allocation5 + $0x60] sm:$0xff]
    %v153 = vld [vmem:[#allocation5 + $0x68] sm:$0xff]
    %v154 = vld [vmem:[#allocation5 + $0x70] sm:$0xff]
    %v155 = vld [vmem:[#allocation5 + $0x78] sm:$0xff]
    %v156 = vld [vmem:[%s2] sm:$0x3]
    %v158 = vlaneseq
    %v159 = vshrl.u32 %v158, 7
    %v160 = vsub.s32 0, %v159
    %v161 = vrot.slane %v156, %v160
    %v162 = vlaneseq
    %v163 = vshrl.u32 %v162, 7
    %v164 = vsub.s32 1, %v163
    %v165 = vrot.slane %v156, %v164
    %v184 = vunpack.c.l.b16 %v140
    %v185 = vunpack.c.h.b16 %v140
    %v186 = vunpack.c.l.b16 %v141
    %v187 = vunpack.c.h.b16 %v141
    %v188 = vunpack.c.l.b16 %v142
    %v189 = vunpack.c.h.b16 %v142
    %v190 = vunpack.c.l.b16 %v143
    %v191 = vunpack.c.h.b16 %v143
    %v192 = vunpack.c.l.b16 %v144
    %v193 = vunpack.c.h.b16 %v144
    %v194 = vunpack.c.l.b16 %v145
    %v195 = vunpack.c.h.b16 %v145
    %v196 = vunpack.c.l.b16 %v146
    %v197 = vunpack.c.h.b16 %v146
    %v198 = vunpack.c.l.b16 %v147
    %v199 = vunpack.c.h.b16 %v147
    %v200 = vunpack.c.l.b16 %v148
    %v201 = vunpack.c.h.b16 %v148
    %v202 = vunpack.c.l.b16 %v149
    %v203 = vunpack.c.h.b16 %v149
    %v204 = vunpack.c.l.b16 %v150
    %v205 = vunpack.c.h.b16 %v150
    %v206 = vunpack.c.l.b16 %v151
    %v207 = vunpack.c.h.b16 %v151
    %v208 = vunpack.c.l.b16 %v152
    %v209 = vunpack.c.h.b16 %v152
    %v210 = vunpack.c.l.b16 %v153
    %v211 = vunpack.c.h.b16 %v153
    %v212 = vunpack.c.l.b16 %v154
    %v213 = vunpack.c.h.b16 %v154
    %v214 = vunpack.c.l.b16 %v155
    %v215 = vunpack.c.h.b16 %v155
    %v216 = vpack.c.b16 %v186, %v184
    %v217 = vpack.c.b16 %v187, %v185
    %v218 = vpack.c.b16 %v190, %v188
    %v219 = vpack.c.b16 %v191, %v189
    %v220 = vpack.c.b16 %v194, %v192
    %v221 = vpack.c.b16 %v195, %v193
    %v222 = vpack.c.b16 %v198, %v196
    %v223 = vpack.c.b16 %v199, %v197
    %v224 = vpack.c.b16 %v202, %v200
    %v225 = vpack.c.b16 %v203, %v201
    %v226 = vpack.c.b16 %v206, %v204
    %v227 = vpack.c.b16 %v207, %v205
    %v228 = vpack.c.b16 %v210, %v208
    %v229 = vpack.c.b16 %v211, %v209
    %v230 = vpack.c.b16 %v214, %v212
    %v231 = vpack.c.b16 %v215, %v213
    %248 = vmatprep.subr.bf16.mxu0 %v217
    %249 = vmatpush1.bf16.msra.mxu0 %v216
    %250 = vmatprep.subr.bf16.mxu0 %v219
    %251 = vmatpush1.bf16.msra.mxu0 %v218
    %252 = vmatprep.subr.bf16.mxu0 %v221
    %253 = vmatpush1.bf16.msra.mxu0 %v220
    %254 = vmatprep.subr.bf16.mxu0 %v223
    %255 = vmatpush1.bf16.msra.mxu0 %v222
    %256 = vmatprep.subr.bf16.mxu0 %v225
    %257 = vmatpush1.bf16.msra.mxu0 %v224
    %258 = vmatprep.subr.bf16.mxu0 %v227
    %259 = vmatpush1.bf16.msra.mxu0 %v226
    %260 = vmatprep.subr.bf16.mxu0 %v229
    %261 = vmatpush1.bf16.msra.mxu0 %v228
    %262 = vmatprep.subr.bf16.mxu0 %v231
    %263 = vmatpush1.bf16.msra.mxu0 %v230
    %264 = vmatprep.subr.bf16.mxu0 0
    %265 = vmatpush1.bf16.msra.mxu0 0
    %266 = vmatprep.subr.bf16.mxu0 0
    %267 = vmatpush1.bf16.msra.mxu0 0
    %268 = vmatprep.subr.bf16.mxu0 0
    %269 = vmatpush1.bf16.msra.mxu0 0
    %270 = vmatprep.subr.bf16.mxu0 0
    %271 = vmatpush1.bf16.msra.mxu0 0
    %272 = vmatprep.subr.bf16.mxu0 0
    %273 = vmatpush1.bf16.msra.mxu0 0
    %274 = vmatprep.subr.bf16.mxu0 0
    %275 = vmatpush1.bf16.msra.mxu0 0
    %276 = vmatprep.subr.bf16.mxu0 0
    %277 = vmatpush1.bf16.msra.mxu0 0
    %278 = vmatprep.subr.bf16.mxu0 0
    %279 = vmatpush1.bf16.msra.mxu0 0
    %280 = vmatprep.mubr.bf16.mxu0 0
    %281 = vmatmul.mubr.bf16.gmra.mrb[0].mxu0 %v139
    %v282 = vpop.f32.mrb[0].mxu0
    %v283 = vadd.f32 %v161, %v282
    %v284 = vpop.f32.mrb[0].mxu0
    %v285 = vadd.f32 %v165, %v284
    %v286 = vpop.f32.mrb[0].mxu0
    %v287 = vpop.f32.mrb[0].mxu0
    %288 = vdwg.mxu0
    %v289 = vmax.f32 %v283, 0.0
    %v290 = vmax.f32 %v285, 0.0
    %v291 = vpack.c.bf16 %v289, %v289
    %v292 = vpack.c.bf16 %v290, %v290
    %v293 = vld [vmem:[#allocation7] sm:$0xf]
    %v294 = vld [vmem:[#allocation7 + $0x4] sm:$0xf]
    %v295 = vld [vmem:[#allocation7 + $0x8] sm:$0xf]
    %v296 = vld [vmem:[#allocation7 + $0xc] sm:$0xf]
    %v297 = vld [vmem:[#allocation7 + $0x10] sm:$0xf]
    %v298 = vld [vmem:[#allocation7 + $0x14] sm:$0xf]
    %v299 = vld [vmem:[#allocation7 + $0x18] sm:$0xf]
    %v300 = vld [vmem:[#allocation7 + $0x1c] sm:$0xf]
    %v301 = vld [vmem:[#allocation7 + $0x20] sm:$0xf]
    %v302 = vld [vmem:[#allocation7 + $0x24] sm:$0xf]
    %v303 = vld [vmem:[#allocation7 + $0x28] sm:$0xf]
    %v304 = vld [vmem:[#allocation7 + $0x2c] sm:$0xf]
    %v305 = vld [vmem:[#allocation7 + $0x30] sm:$0xf]
    %v306 = vld [vmem:[#allocation7 + $0x34] sm:$0xf]
    %v307 = vld [vmem:[#allocation7 + $0x38] sm:$0xf]
    %v308 = vld [vmem:[#allocation7 + $0x3c] sm:$0xf]
    %v309 = vld [vmem:[#allocation7 + $0x40] sm:$0xf]
    %v310 = vld [vmem:[#allocation7 + $0x44] sm:$0xf]
    %v311 = vld [vmem:[#allocation7 + $0x48] sm:$0xf]
    %v312 = vld [vmem:[#allocation7 + $0x4c] sm:$0xf]
    %v313 = vld [vmem:[#allocation7 + $0x50] sm:$0xf]
    %v314 = vld [vmem:[#allocation7 + $0x54] sm:$0xf]
    %v315 = vld [vmem:[#allocation7 + $0x58] sm:$0xf]
    %v316 = vld [vmem:[#allocation7 + $0x5c] sm:$0xf]
    %v317 = vld [vmem:[#allocation7 + $0x60] sm:$0xf]
    %v318 = vld [vmem:[#allocation7 + $0x64] sm:$0xf]
    %v319 = vld [vmem:[#allocation7 + $0x68] sm:$0xf]
    %v320 = vld [vmem:[#allocation7 + $0x6c] sm:$0xf]
    %v321 = vld [vmem:[#allocation7 + $0x70] sm:$0xf]
    %v322 = vld [vmem:[#allocation7 + $0x74] sm:$0xf]
    %v323 = vld [vmem:[#allocation7 + $0x78] sm:$0xf]
    %v324 = vld [vmem:[#allocation7 + $0x7c] sm:$0xf]
    %v325 = vld [vmem:[%s4] sm:$0x1]
    %v327 = vlaneseq
    %v328 = vshrl.u32 %v327, 7
    %v329 = vsub.s32 0, %v328
    %v330 = vrot.slane %v325, %v329
    %v364 = vunpack.c.l.b16 %v293
    %v365 = vunpack.c.l.b16 %v294
    %v366 = vunpack.c.l.b16 %v295
    %v367 = vunpack.c.l.b16 %v296
    %v368 = vunpack.c.l.b16 %v297
    %v369 = vunpack.c.l.b16 %v298
    %v370 = vunpack.c.l.b16 %v299
    %v371 = vunpack.c.l.b16 %v300
    %v372 = vunpack.c.l.b16 %v301
    %v373 = vunpack.c.l.b16 %v302
    %v374 = vunpack.c.l.b16 %v303
    %v375 = vunpack.c.l.b16 %v304
    %v376 = vunpack.c.l.b16 %v305
    %v377 = vunpack.c.l.b16 %v306
    %v378 = vunpack.c.l.b16 %v307
    %v379 = vunpack.c.l.b16 %v308
    %v380 = vunpack.c.l.b16 %v309
    %v381 = vunpack.c.l.b16 %v310
    %v382 = vunpack.c.l.b16 %v311
    %v383 = vunpack.c.l.b16 %v312
    %v384 = vunpack.c.l.b16 %v313
    %v385 = vunpack.c.l.b16 %v314
    %v386 = vunpack.c.l.b16 %v315
    %v387 = vunpack.c.l.b16 %v316
    %v388 = vunpack.c.l.b16 %v317
    %v389 = vunpack.c.l.b16 %v318
    %v390 = vunpack.c.l.b16 %v319
    %v391 = vunpack.c.l.b16 %v320
    %v392 = vunpack.c.l.b16 %v321
    %v393 = vunpack.c.l.b16 %v322
    %v394 = vunpack.c.l.b16 %v323
    %v395 = vunpack.c.l.b16 %v324
    %v396 = vpack.c.b16 %v365, %v364
    %v397 = vpack.c.b16 %v367, %v366
    %v398 = vpack.c.b16 %v369, %v368
    %v399 = vpack.c.b16 %v371, %v370
    %v400 = vpack.c.b16 %v373, %v372
    %v401 = vpack.c.b16 %v375, %v374
    %v402 = vpack.c.b16 %v377, %v376
    %v403 = vpack.c.b16 %v379, %v378
    %v404 = vpack.c.b16 %v381, %v380
    %v405 = vpack.c.b16 %v383, %v382
    %v406 = vpack.c.b16 %v385, %v384
    %v407 = vpack.c.b16 %v387, %v386
    %v408 = vpack.c.b16 %v389, %v388
    %v409 = vpack.c.b16 %v391, %v390
    %v410 = vpack.c.b16 %v393, %v392
    %v411 = vpack.c.b16 %v395, %v394
    %428 = vmatprep.subr.bf16.mxu0 0
    %429 = vmatpush1.bf16.msra.mxu0 %v396
    %430 = vmatprep.subr.bf16.mxu0 0
    %431 = vmatpush1.bf16.msra.mxu0 %v397
    %432 = vmatprep.subr.bf16.mxu0 0
    %433 = vmatpush1.bf16.msra.mxu0 %v398
    %434 = vmatprep.subr.bf16.mxu0 0
    %435 = vmatpush1.bf16.msra.mxu0 %v399
    %436 = vmatprep.subr.bf16.mxu0 0
    %437 = vmatpush1.bf16.msra.mxu0 %v400
    %438 = vmatprep.subr.bf16.mxu0 0
    %439 = vmatpush1.bf16.msra.mxu0 %v401
    %440 = vmatprep.subr.bf16.mxu0 0
    %441 = vmatpush1.bf16.msra.mxu0 %v402
    %442 = vmatprep.subr.bf16.mxu0 0
    %443 = vmatpush1.bf16.msra.mxu0 %v403
    %444 = vmatprep.subr.bf16.mxu0 0
    %445 = vmatpush1.bf16.msra.mxu0 %v404
    %446 = vmatprep.subr.bf16.mxu0 0
    %447 = vmatpush1.bf16.msra.mxu0 %v405
    %448 = vmatprep.subr.bf16.mxu0 0
    %449 = vmatpush1.bf16.msra.mxu0 %v406
    %450 = vmatprep.subr.bf16.mxu0 0
    %451 = vmatpush1.bf16.msra.mxu0 %v407
    %452 = vmatprep.subr.bf16.mxu0 0
    %453 = vmatpush1.bf16.msra.mxu0 %v408
    %454 = vmatprep.subr.bf16.mxu0 0
    %455 = vmatpush1.bf16.msra.mxu0 %v409
    %456 = vmatprep.subr.bf16.mxu0 0
    %457 = vmatpush1.bf16.msra.mxu0 %v410
    %458 = vmatprep.subr.bf16.mxu0 0
    %459 = vmatpush1.bf16.msra.mxu0 %v411
    %460 = vmatprep.mubr.bf16.mxu0 %v292
    %461 = vmatmul.mubr.bf16.gmra.mrb[0].mxu0 %v291
    %v462 = vpop.f32.mrb[0].mxu0
    %v463 = vadd.f32 %v330, %v462
    %v464 = vpop.f32.mrb[0].mxu0
    %v465 = vpop.f32.mrb[0].mxu0
    %v466 = vpop.f32.mrb[0].mxu0
    %467 = vdwg.mxu0
    %v468 = vmax.f32 %v463, 0.0
    %v469 = vpack.c.bf16 %v468, %v468
    %v470 = vld [vmem:[#allocation8] sm:$0xf]
    %v471 = vld [vmem:[#allocation8 + $0x4] sm:$0xf]
    %v472 = vld [vmem:[#allocation8 + $0x8] sm:$0xf]
    %v473 = vld [vmem:[#allocation8 + $0xc] sm:$0xf]
    %v474 = vld [vmem:[#allocation8 + $0x10] sm:$0xf]
    %v475 = vld [vmem:[#allocation8 + $0x14] sm:$0xf]
    %v476 = vld [vmem:[#allocation8 + $0x18] sm:$0xf]
    %v477 = vld [vmem:[#allocation8 + $0x1c] sm:$0xf]
    %v478 = vld [vmem:[#allocation8 + $0x20] sm:$0xf]
    %v479 = vld [vmem:[#allocation8 + $0x24] sm:$0xf]
    %v480 = vld [vmem:[#allocation8 + $0x28] sm:$0xf]
    %v481 = vld [vmem:[#allocation8 + $0x2c] sm:$0xf]
    %v482 = vld [vmem:[#allocation8 + $0x30] sm:$0xf]
    %v483 = vld [vmem:[#allocation8 + $0x34] sm:$0xf]
    %v484 = vld [vmem:[#allocation8 + $0x38] sm:$0xf]
    %v485 = vld [vmem:[#allocation8 + $0x3c] sm:$0xf]
    %v486 = vld [vmem:[%s6] sm:$0x1]
    %v488 = vlaneseq
    %v489 = vshrl.u32 %v488, 7
    %v490 = vsub.s32 0, %v489
    %v491 = vrot.slane %v486, %v490
    %v509 = vunpack.c.l.b16 %v470
    %v510 = vunpack.c.l.b16 %v471
    %v511 = vunpack.c.l.b16 %v472
    %v512 = vunpack.c.l.b16 %v473
    %v513 = vunpack.c.l.b16 %v474
    %v514 = vunpack.c.l.b16 %v475
    %v515 = vunpack.c.l.b16 %v476
    %v516 = vunpack.c.l.b16 %v477
    %v517 = vunpack.c.l.b16 %v478
    %v518 = vunpack.c.l.b16 %v479
    %v519 = vunpack.c.l.b16 %v480
    %v520 = vunpack.c.l.b16 %v481
    %v521 = vunpack.c.l.b16 %v482
    %v522 = vunpack.c.l.b16 %v483
    %v523 = vunpack.c.l.b16 %v484
    %v524 = vunpack.c.l.b16 %v485
    %v525 = vpack.c.b16 %v510, %v509
    %v526 = vpack.c.b16 %v512, %v511
    %v527 = vpack.c.b16 %v514, %v513
    %v528 = vpack.c.b16 %v516, %v515
    %v529 = vpack.c.b16 %v518, %v517
    %v530 = vpack.c.b16 %v520, %v519
    %v531 = vpack.c.b16 %v522, %v521
    %v532 = vpack.c.b16 %v524, %v523
    %541 = vmatprep.subr.bf16.mxu0 0
    %542 = vmatpush1.bf16.msra.mxu0 %v525
    %543 = vmatprep.subr.bf16.mxu0 0
    %544 = vmatpush1.bf16.msra.mxu0 %v526
    %545 = vmatprep.subr.bf16.mxu0 0
    %546 = vmatpush1.bf16.msra.mxu0 %v527
    %547 = vmatprep.subr.bf16.mxu0 0
    %548 = vmatpush1.bf16.msra.mxu0 %v528
    %549 = vmatprep.subr.bf16.mxu0 0
    %550 = vmatpush1.bf16.msra.mxu0 %v529
    %551 = vmatprep.subr.bf16.mxu0 0
    %552 = vmatpush1.bf16.msra.mxu0 %v530
    %553 = vmatprep.subr.bf16.mxu0 0
    %554 = vmatpush1.bf16.msra.mxu0 %v531
    %555 = vmatprep.subr.bf16.mxu0 0
    %556 = vmatpush1.bf16.msra.mxu0 %v532
    %557 = vmatprep.subr.bf16.mxu0 0
    %558 = vmatpush1.bf16.msra.mxu0 0
    %559 = vmatprep.subr.bf16.mxu0 0
    %560 = vmatpush1.bf16.msra.mxu0 0
    %561 = vmatprep.subr.bf16.mxu0 0
    %562 = vmatpush1.bf16.msra.mxu0 0
    %563 = vmatprep.subr.bf16.mxu0 0
    %564 = vmatpush1.bf16.msra.mxu0 0
    %565 = vmatprep.subr.bf16.mxu0 0
    %566 = vmatpush1.bf16.msra.mxu0 0
    %567 = vmatprep.subr.bf16.mxu0 0
    %568 = vmatpush1.bf16.msra.mxu0 0
    %569 = vmatprep.subr.bf16.mxu0 0
    %570 = vmatpush1.bf16.msra.mxu0 0
    %571 = vmatprep.subr.bf16.mxu0 0
    %572 = vmatpush1.bf16.msra.mxu0 0
    %573 = vmatprep.mubr.bf16.mxu0 0
    %574 = vmatmul.mubr.bf16.gmra.mrb[0].mxu0 %v469
    %v575 = vpop.f32.mrb[0].mxu0
    %v576 = vadd.f32 %v491, %v575
    %v577 = vpop.f32.mrb[0].mxu0
    %v578 = vpop.f32.mrb[0].mxu0
    %v579 = vpop.f32.mrb[0].mxu0
    %580 = vdwg.mxu0
    %v581 = vmax.f32 %v576, 0.0
    %v582 = vpack.c.bf16 %v581, %v581
    %v583 = vld [vmem:[#allocation10] sm:$0xf]
    %v584 = vld [vmem:[#allocation10 + $0x4] sm:$0xf]
    %v585 = vld [vmem:[#allocation10 + $0x8] sm:$0xf]
    %v586 = vld [vmem:[#allocation10 + $0xc] sm:$0xf]
    %v587 = vld [vmem:[#allocation10 + $0x10] sm:$0xf]
    %v588 = vld [vmem:[#allocation10 + $0x14] sm:$0xf]
    %v589 = vld [vmem:[#allocation10 + $0x18] sm:$0xf]
    %v590 = vld [vmem:[#allocation10 + $0x1c] sm:$0xf]
    %v591 = vld [vmem:[#allocation10 + $0x20] sm:$0xf]
    %v592 = vld [vmem:[#allocation10 + $0x24] sm:$0xf]
    %v593 = vld [vmem:[#allocation10 + $0x28] sm:$0xf]
    %v594 = vld [vmem:[#allocation10 + $0x2c] sm:$0xf]
    %v595 = vld [vmem:[#allocation10 + $0x30] sm:$0xf]
    %v596 = vld [vmem:[#allocation10 + $0x34] sm:$0xf]
    %v597 = vld [vmem:[#allocation10 + $0x38] sm:$0xf]
    %v598 = vld [vmem:[#allocation10 + $0x3c] sm:$0xf]
    %v599 = vld [vmem:[%s8] sm:$0x1]
    %v601 = vlaneseq
    %v602 = vshrl.u32 %v601, 7
    %v603 = vsub.s32 0, %v602
    %v604 = vrot.slane %v599, %v603
    %v622 = vunpack.c.l.b16 %v583
    %v623 = vunpack.c.l.b16 %v584
    %v624 = vunpack.c.l.b16 %v585
    %v625 = vunpack.c.l.b16 %v586
    %v626 = vunpack.c.l.b16 %v587
    %v627 = vunpack.c.l.b16 %v588
    %v628 = vunpack.c.l.b16 %v589
    %v629 = vunpack.c.l.b16 %v590
    %v630 = vunpack.c.l.b16 %v591
    %v631 = vunpack.c.l.b16 %v592
    %v632 = vunpack.c.l.b16 %v593
    %v633 = vunpack.c.l.b16 %v594
    %v634 = vunpack.c.l.b16 %v595
    %v635 = vunpack.c.l.b16 %v596
    %v636 = vunpack.c.l.b16 %v597
    %v637 = vunpack.c.l.b16 %v598
    %v638 = vpack.c.b16 %v623, %v622
    %v639 = vpack.c.b16 %v625, %v624
    %v640 = vpack.c.b16 %v627, %v626
    %v641 = vpack.c.b16 %v629, %v628
    %v642 = vpack.c.b16 %v631, %v630
    %v643 = vpack.c.b16 %v633, %v632
    %v644 = vpack.c.b16 %v635, %v634
    %v645 = vpack.c.b16 %v637, %v636
    %654 = vmatprep.subr.bf16.mxu0 0
    %655 = vmatpush1.bf16.msra.mxu0 %v638
    %656 = vmatprep.subr.bf16.mxu0 0
    %657 = vmatpush1.bf16.msra.mxu0 %v639
    %658 = vmatprep.subr.bf16.mxu0 0
    %659 = vmatpush1.bf16.msra.mxu0 %v640
    %660 = vmatprep.subr.bf16.mxu0 0
    %661 = vmatpush1.bf16.msra.mxu0 %v641
    %662 = vmatprep.subr.bf16.mxu0 0
    %663 = vmatpush1.bf16.msra.mxu0 %v642
    %664 = vmatprep.subr.bf16.mxu0 0
    %665 = vmatpush1.bf16.msra.mxu0 %v643
    %666 = vmatprep.subr.bf16.mxu0 0
    %667 = vmatpush1.bf16.msra.mxu0 %v644
    %668 = vmatprep.subr.bf16.mxu0 0
    %669 = vmatpush1.bf16.msra.mxu0 %v645
    %670 = vmatprep.subr.bf16.mxu0 0
    %671 = vmatpush1.bf16.msra.mxu0 0
    %672 = vmatprep.subr.bf16.mxu0 0
    %673 = vmatpush1.bf16.msra.mxu0 0
    %674 = vmatprep.subr.bf16.mxu0 0
    %675 = vmatpush1.bf16.msra.mxu0 0
    %676 = vmatprep.subr.bf16.mxu0 0
    %677 = vmatpush1.bf16.msra.mxu0 0
    %678 = vmatprep.subr.bf16.mxu0 0
    %679 = vmatpush1.bf16.msra.mxu0 0
    %680 = vmatprep.subr.bf16.mxu0 0
    %681 = vmatpush1.bf16.msra.mxu0 0
    %682 = vmatprep.subr.bf16.mxu0 0
    %683 = vmatpush1.bf16.msra.mxu0 0
    %684 = vmatprep.subr.bf16.mxu0 0
    %685 = vmatpush1.bf16.msra.mxu0 0
    %686 = vmatprep.mubr.bf16.mxu0 0
    %687 = vmatmul.mubr.bf16.gmra.mrb[0].mxu0 %v582
    %v688 = vpop.f32.mrb[0].mxu0
    %v689 = vadd.f32 %v604, %v688
    %v690 = vpop.f32.mrb[0].mxu0
    %v691 = vpop.f32.mrb[0].mxu0
    %v692 = vpop.f32.mrb[0].mxu0
    %693 = vdwg.mxu0
    %v694 = vmax.f32 %v689, 0.0
    %v695 = vpack.c.bf16 %v694, %v694
    %v696 = vld [vmem:[#allocation11] sm:$0xf]
    %v697 = vld [vmem:[#allocation11 + $0x4] sm:$0xf]
    %v698 = vld [vmem:[#allocation11 + $0x8] sm:$0xf]
    %v699 = vld [vmem:[#allocation11 + $0xc] sm:$0xf]
    %v700 = vld [vmem:[#allocation11 + $0x10] sm:$0xf]
    %v701 = vld [vmem:[#allocation11 + $0x14] sm:$0xf]
    %v702 = vld [vmem:[#allocation11 + $0x18] sm:$0xf]
    %v703 = vld [vmem:[#allocation11 + $0x1c] sm:$0xf]
    %v704 = vld [vmem:[#allocation11 + $0x20] sm:$0xf]
    %v705 = vld [vmem:[#allocation11 + $0x24] sm:$0xf]
    %v706 = vld [vmem:[#allocation11 + $0x28] sm:$0xf]
    %v707 = vld [vmem:[#allocation11 + $0x2c] sm:$0xf]
    %v708 = vld [vmem:[#allocation11 + $0x30] sm:$0xf]
    %v709 = vld [vmem:[#allocation11 + $0x34] sm:$0xf]
    %v710 = vld [vmem:[#allocation11 + $0x38] sm:$0xf]
    %v711 = vld [vmem:[#allocation11 + $0x3c] sm:$0xf]
    %v712 = vld [vmem:[%s10] sm:$0x1]
    %v714 = vlaneseq
    %v715 = vshrl.u32 %v714, 7
    %v716 = vsub.s32 0, %v715
    %v717 = vrot.slane %v712, %v716
    %v735 = vunpack.c.l.b16 %v696
    %v736 = vunpack.c.l.b16 %v697
    %v737 = vunpack.c.l.b16 %v698
    %v738 = vunpack.c.l.b16 %v699
    %v739 = vunpack.c.l.b16 %v700
    %v740 = vunpack.c.l.b16 %v701
    %v741 = vunpack.c.l.b16 %v702
    %v742 = vunpack.c.l.b16 %v703
    %v743 = vunpack.c.l.b16 %v704
    %v744 = vunpack.c.l.b16 %v705
    %v745 = vunpack.c.l.b16 %v706
    %v746 = vunpack.c.l.b16 %v707
    %v747 = vunpack.c.l.b16 %v708
    %v748 = vunpack.c.l.b16 %v709
    %v749 = vunpack.c.l.b16 %v710
    %v750 = vunpack.c.l.b16 %v711
    %v751 = vpack.c.b16 %v736, %v735
    %v752 = vpack.c.b16 %v738, %v737
    %v753 = vpack.c.b16 %v740, %v739
    %v754 = vpack.c.b16 %v742, %v741
    %v755 = vpack.c.b16 %v744, %v743
    %v756 = vpack.c.b16 %v746, %v745
    %v757 = vpack.c.b16 %v748, %v747
    %v758 = vpack.c.b16 %v750, %v749
    %767 = vmatprep.subr.bf16.mxu0 0
    %768 = vmatpush1.bf16.msra.mxu0 %v751
    %769 = vmatprep.subr.bf16.mxu0 0
    %770 = vmatpush1.bf16.msra.mxu0 %v752
    %771 = vmatprep.subr.bf16.mxu0 0
    %772 = vmatpush1.bf16.msra.mxu0 %v753
    %773 = vmatprep.subr.bf16.mxu0 0
    %774 = vmatpush1.bf16.msra.mxu0 %v754
    %775 = vmatprep.subr.bf16.mxu0 0
    %776 = vmatpush1.bf16.msra.mxu0 %v755
    %777 = vmatprep.subr.bf16.mxu0 0
    %778 = vmatpush1.bf16.msra.mxu0 %v756
    %779 = vmatprep.subr.bf16.mxu0 0
    %780 = vmatpush1.bf16.msra.mxu0 %v757
    %781 = vmatprep.subr.bf16.mxu0 0
    %782 = vmatpush1.bf16.msra.mxu0 %v758
    %783 = vmatprep.subr.bf16.mxu0 0
    %784 = vmatpush1.bf16.msra.mxu0 0
    %785 = vmatprep.subr.bf16.mxu0 0
    %786 = vmatpush1.bf16.msra.mxu0 0
    %787 = vmatprep.subr.bf16.mxu0 0
    %788 = vmatpush1.bf16.msra.mxu0 0
    %789 = vmatprep.subr.bf16.mxu0 0
    %790 = vmatpush1.bf16.msra.mxu0 0
    %791 = vmatprep.subr.bf16.mxu0 0
    %792 = vmatpush1.bf16.msra.mxu0 0
    %793 = vmatprep.subr.bf16.mxu0 0
    %794 = vmatpush1.bf16.msra.mxu0 0
    %795 = vmatprep.subr.bf16.mxu0 0
    %796 = vmatpush1.bf16.msra.mxu0 0
    %797 = vmatprep.subr.bf16.mxu0 0
    %798 = vmatpush1.bf16.msra.mxu0 0
    %799 = vmatprep.mubr.bf16.mxu0 0
    %800 = vmatmul.mubr.bf16.gmra.mrb[0].mxu0 %v695
    %v801 = vpop.f32.mrb[0].mxu0
    %v802 = vadd.f32 %v717, %v801
    %v803 = vpop.f32.mrb[0].mxu0
    %v804 = vpop.f32.mrb[0].mxu0
    %v805 = vpop.f32.mrb[0].mxu0
    %806 = vdwg.mxu0
    %v807 = vmax.f32 %v802, 0.0
    %v808 = vpack.c.bf16 %v807, %v807
    %v809 = vld [vmem:[#allocation13] sm:$0xf]
    %v810 = vld [vmem:[#allocation13 + $0x4] sm:$0xf]
    %v811 = vld [vmem:[#allocation13 + $0x8] sm:$0xf]
    %v812 = vld [vmem:[#allocation13 + $0xc] sm:$0xf]
    %v813 = vld [vmem:[#allocation13 + $0x10] sm:$0xf]
    %v814 = vld [vmem:[#allocation13 + $0x14] sm:$0xf]
    %v815 = vld [vmem:[#allocation13 + $0x18] sm:$0xf]
    %v816 = vld [vmem:[#allocation13 + $0x1c] sm:$0xf]
    %v817 = vld [vmem:[#allocation13 + $0x20] sm:$0xf]
    %v818 = vld [vmem:[#allocation13 + $0x24] sm:$0xf]
    %v819 = vld [vmem:[#allocation13 + $0x28] sm:$0xf]
    %v820 = vld [vmem:[#allocation13 + $0x2c] sm:$0xf]
    %v821 = vld [vmem:[#allocation13 + $0x30] sm:$0xf]
    %v822 = vld [vmem:[#allocation13 + $0x34] sm:$0xf]
    %v823 = vld [vmem:[#allocation13 + $0x38] sm:$0xf]
    %v824 = vld [vmem:[#allocation13 + $0x3c] sm:$0xf]
    %v825 = vld [vmem:[%s12] sm:$0x1]
    %v827 = vlaneseq
    %v828 = vshrl.u32 %v827, 7
    %v829 = vsub.s32 0, %v828
    %v830 = vrot.slane %v825, %v829
    %v848 = vunpack.c.l.b16 %v809
    %v849 = vunpack.c.l.b16 %v810
    %v850 = vunpack.c.l.b16 %v811
    %v851 = vunpack.c.l.b16 %v812
    %v852 = vunpack.c.l.b16 %v813
    %v853 = vunpack.c.l.b16 %v814
    %v854 = vunpack.c.l.b16 %v815
    %v855 = vunpack.c.l.b16 %v816
    %v856 = vunpack.c.l.b16 %v817
    %v857 = vunpack.c.l.b16 %v818
    %v858 = vunpack.c.l.b16 %v819
    %v859 = vunpack.c.l.b16 %v820
    %v860 = vunpack.c.l.b16 %v821
    %v861 = vunpack.c.l.b16 %v822
    %v862 = vunpack.c.l.b16 %v823
    %v863 = vunpack.c.l.b16 %v824
    %v864 = vpack.c.b16 %v849, %v848
    %v865 = vpack.c.b16 %v851, %v850
    %v866 = vpack.c.b16 %v853, %v852
    %v867 = vpack.c.b16 %v855, %v854
    %v868 = vpack.c.b16 %v857, %v856
    %v869 = vpack.c.b16 %v859, %v858
    %v870 = vpack.c.b16 %v861, %v860
    %v871 = vpack.c.b16 %v863, %v862
    %880 = vmatprep.subr.bf16.mxu0 0
    %881 = vmatpush1.bf16.msra.mxu0 %v864
    %882 = vmatprep.subr.bf16.mxu0 0
    %883 = vmatpush1.bf16.msra.mxu0 %v865
    %884 = vmatprep.subr.bf16.mxu0 0
    %885 = vmatpush1.bf16.msra.mxu0 %v866
    %886 = vmatprep.subr.bf16.mxu0 0
    %887 = vmatpush1.bf16.msra.mxu0 %v867
    %888 = vmatprep.subr.bf16.mxu0 0
    %889 = vmatpush1.bf16.msra.mxu0 %v868
    %890 = vmatprep.subr.bf16.mxu0 0
    %891 = vmatpush1.bf16.msra.mxu0 %v869
    %892 = vmatprep.subr.bf16.mxu0 0
    %893 = vmatpush1.bf16.msra.mxu0 %v870
    %894 = vmatprep.subr.bf16.mxu0 0
    %895 = vmatpush1.bf16.msra.mxu0 %v871
    %896 = vmatprep.subr.bf16.mxu0 0
    %897 = vmatpush1.bf16.msra.mxu0 0
    %898 = vmatprep.subr.bf16.mxu0 0
    %899 = vmatpush1.bf16.msra.mxu0 0
    %900 = vmatprep.subr.bf16.mxu0 0
    %901 = vmatpush1.bf16.msra.mxu0 0
    %902 = vmatprep.subr.bf16.mxu0 0
    %903 = vmatpush1.bf16.msra.mxu0 0
    %904 = vmatprep.subr.bf16.mxu0 0
    %905 = vmatpush1.bf16.msra.mxu0 0
    %906 = vmatprep.subr.bf16.mxu0 0
    %907 = vmatpush1.bf16.msra.mxu0 0
    %908 = vmatprep.subr.bf16.mxu0 0
    %909 = vmatpush1.bf16.msra.mxu0 0
    %910 = vmatprep.subr.bf16.mxu0 0
    %911 = vmatpush1.bf16.msra.mxu0 0
    %912 = vmatprep.mubr.bf16.mxu0 0
    %913 = vmatmul.mubr.bf16.gmra.mrb[0].mxu0 %v808
    %v914 = vpop.f32.mrb[0].mxu0
    %v915 = vadd.f32 %v830, %v914
    %v916 = vpop.f32.mrb[0].mxu0
    %v917 = vpop.f32.mrb[0].mxu0
    %v918 = vpop.f32.mrb[0].mxu0
    %919 = vdwg.mxu0
    %v920 = vmax.f32 %v915, 0.0
    %921 = vst [vmem:[#allocation14] sm:$0xff] %v920
    // Predicated region
    $region82: #{tpu_custom_call.1} parent=1 // pred_check
      _
    $region83: #{tpu_custom_call.1} parent=1 // pred_check_branch
      %923 = sbr.rel (0) target = $region85
    $region84: #{tpu_custom_call.1} parent=1 // pred_region
      %s925 = ssub.s32 128, 128
      %926 = vsyncadd [#allocation4], %s925
      %s928 = sshll.u32 [#allocation14], 4
      %s929 = int_to_ptr.vmem [resolvable:$true] %s928
      %931 = dma.vmem_to_hbm [thread:$0]  %s929, 128, %s13, [#allocation4]
    $region85: #{tpu_custom_call.1} parent=1 // pred_fallthru
      _
    // Predicated region
    $region86: #{tpu_custom_call.1} parent=1 // pred_check
      _
    $region87: #{tpu_custom_call.1} parent=1 // pred_check_branch
      %933 = sbr.rel (0) target = $region89
    $region88: #{tpu_custom_call.1} parent=1 // pred_region
      %934 = dma.done [#allocation4], 128
    $region89: #{tpu_custom_call.1} parent=1 // pred_fallthru
      _
    %935 = vsyncpa [#allocation3], 1
    %936 = vsyncpa [#allocation6], 1
    %937 = vsyncpa [#allocation9], 1
    %938 = vsyncpa [#allocation12], 1
    %939 = vsyncpa [#allocation4], 1

</llo_original>
